<compile_context>
chip_gen: v6e
topology: v6e:2x2x1
jax: 0.10.0
libtpu: 0.0.40
codegen_flags: <defaults>
</compile_context>

<pallas_src>
import functools

import jax
import jax.numpy as jnp
import numpy as np
from jax.experimental import pallas as pl
from jax.experimental.pallas import tpu as pltpu


def _sigloss_partial_kernel(pred_ref, gt_ref, out_ref, *, eps, valid_mask,
                            max_depth, block_rows, rows_total, need_row_mask):
    pred = pred_ref[...].astype(jnp.float32)
    gt = gt_ref[...].astype(jnp.float32)

    # One log per input element. The where-select below keeps NaN/Inf from
    # invalid or out-of-bounds lanes out of the sums (select does not
    # propagate the unselected branch).
    g = jnp.log(pred + eps) - jnp.log(gt + eps)

    mask = None
    if valid_mask:
        mask = gt > 0.0
        if max_depth is not None:
            mask = jnp.logical_and(mask, gt <= max_depth)
    if need_row_mask:
        # Emitted only when the last block is partial: block-local rows beyond
        # the real array extent hold undefined data and must be excluded.
        i = pl.program_id(0)
        row = jax.lax.broadcasted_iota(jnp.int32, (block_rows, 128), 0)
        in_bounds = row < (rows_total - i * block_rows)
        mask = in_bounds if mask is None else jnp.logical_and(mask, in_bounds)

    if mask is not None:
        g = jnp.where(mask, g, 0.0)

    sg = jnp.sum(g, axis=0, keepdims=True)        # (1, 128)
    sgg = jnp.sum(g * g, axis=0, keepdims=True)   # (1, 128)
    if valid_mask:
        cnt = jnp.sum(mask.astype(jnp.float32), axis=0, keepdims=True)
    else:
        cnt = jnp.zeros_like(sg)                  # n is analytic host-side

    # Single full-tile, lane-dense store per grid step:
    # sublane 0 = sum g, 1 = sum g^2, 2 = count, 3..7 = zero.
    packed = jnp.concatenate(
        [sg, sgg, cnt, jnp.zeros((5, 128), jnp.float32)], axis=0)
    out_ref[...] = packed[None, :, :]


def sigloss_pallas(depth_pred, depth_gt, *, valid_mask=True, loss_weight=1.0,
                   max_depth=None, eps=1e-3, max_block_rows=8192):
    """Forward of SigLoss. Inputs are NCHW; returns a scalar."""
    assert depth_pred.shape == depth_gt.shape
    pred_flat = depth_pred.reshape(-1)
    gt_flat = depth_gt.reshape(-1)
    total = int(pred_flat.shape[0])

    rows = total // 128
    rem = total - rows * 128
    kelems = rows * 128

    eps = float(eps)
    max_depth_f = None if max_depth is None else float(max_depth)

    zero = jnp.float32(0.0)
    s_k = ss_k = n_k = zero

    if rows > 0:
        # (rows, 128) view of the 128-aligned prefix; a free reshape (no
        # padded copies) when total is already a multiple of 128.
        if rem == 0:
            pred2 = pred_flat.reshape(rows, 128)
            gt2 = gt_flat.reshape(rows, 128)
        else:
            pred2 = jax.lax.slice(pred_flat, (0,), (kelems,)).reshape(rows, 128)
            gt2 = jax.lax.slice(gt_flat, (0,), (kelems,)).reshape(rows, 128)

        if rows <= int(max_block_rows):
            block_rows = rows                    # single full-extent block
        else:
            block_rows = (int(max_block_rows) // 8) * 8
        num_blocks = int(pl.cdiv(rows, block_rows))
        need_row_mask = (rows % block_rows) != 0  # only the last block is partial

        kernel = functools.partial(
            _sigloss_partial_kernel,
            eps=eps,
            valid_mask=bool(valid_mask),
            max_depth=max_depth_f,
            block_rows=int(block_rows),
            rows_total=int(rows),
            need_row_mask=bool(need_row_mask))

        part = pl.pallas_call(
            kernel,
            out_shape=jax.ShapeDtypeStruct((num_blocks, 8, 128), jnp.float32),
            grid_spec=pltpu.PrefetchScalarGridSpec(
                num_scalar_prefetch=0,
                grid=(num_blocks,),
                in_specs=[
                    pl.BlockSpec((block_rows, 128), lambda i: (i, 0)),
                    pl.BlockSpec((block_rows, 128), lambda i: (i, 0)),
                ],
                out_specs=pl.BlockSpec((1, 8, 128), lambda i: (i, 0, 0)),
            ),
            compiler_params=pltpu.CompilerParams(
                # TODO(synk): on v7x, verify this axis shards across both
                # TensorCores in the trace; if one TC idles, switch to
                # pltpu.CORE_PARALLEL.
                dimension_semantics=("parallel",),
                vmem_limit_bytes=32 * 1024 * 1024),
        )(pred2, gt2)

        s_k = jnp.sum(part[:, 0, :])
        ss_k = jnp.sum(part[:, 1, :])
        if valid_mask:
            n_k = jnp.sum(part[:, 2, :])
        else:
            n_k = jnp.float32(kelems)

    # < 128-element remainder handled in plain JAX (keeps the kernel free of
    # padding and avoids padded copies of the full inputs).
    s_t = ss_t = n_t = zero
    if rem > 0:
        tp = pred_flat[kelems:].astype(jnp.float32)
        tg = gt_flat[kelems:].astype(jnp.float32)
        g_t = jnp.log(tp + eps) - jnp.log(tg + eps)
        if valid_mask:
            m_t = tg > 0.0
            if max_depth_f is not None:
                m_t = jnp.logical_and(m_t, tg <= max_depth_f)
            g_t = jnp.where(m_t, g_t, 0.0)
            n_t = jnp.sum(m_t.astype(jnp.float32))
        else:
            n_t = jnp.float32(rem)
        s_t = jnp.sum(g_t)
        ss_t = jnp.sum(g_t * g_t)

    n = n_k + n_t
    s = s_k + s_t
    ss = ss_k + ss_t
    mean = s / n
    # torch.var default is unbiased (divide by N-1). No n<=1 guard, matching
    # the PyTorch module (which also produces NaN in that degenerate case).
    # Note: single-pass variance can lose precision vs a two-pass reference
    # for extremely low-variance g; within tolerance for realistic depth maps.
    var = (ss - n * mean * mean) / (n - 1.0)
    dg = var + 0.15 * mean * mean
    return loss_weight * jnp.sqrt(dg)


def sigloss_ref(depth_pred, depth_gt, *, valid_mask=True, loss_weight=1.0,
                max_depth=None, eps=1e-3):
    """Pure-JAX reference matching the PyTorch semantics (two-pass variance)."""
    pred = depth_pred.reshape(-1).astype(jnp.float32)
    gt = depth_gt.reshape(-1).astype(jnp.float32)
    if valid_mask:
        mask = gt > 0
        if max_depth is not None:
            mask = jnp.logical_and(gt > 0, gt <= max_depth)
    else:
        mask = jnp.ones_like(gt, dtype=bool)
    n = jnp.sum(mask.astype(jnp.float32))
    g = jnp.log(jnp.where(mask, pred, 1.0) + eps) - \
        jnp.log(jnp.where(mask, gt, 1.0) + eps)
    g = jnp.where(mask, g, 0.0)
    mean = jnp.sum(g) / n
    var = jnp.sum(jnp.where(mask, (g - mean) ** 2, 0.0)) / (n - 1.0)
    dg = var + 0.15 * mean ** 2
    return loss_weight * jnp.sqrt(dg)


if __name__ == "__main__":
    key = jax.random.PRNGKey(0)
    k1, k2, k3 = jax.random.split(key, 3)

    # NCHW single-channel depth maps; total = 4096 elements (multiple of 128),
    # so the kernel path runs with a single full-extent block and no masking.
    B, C, H, W = 2, 1, 32, 64
    depth_pred = jax.random.uniform(k1, (B, C, H, W), jnp.float32,
                                    minval=0.1, maxval=10.0)
    depth_gt = jax.random.uniform(k2, (B, C, H, W), jnp.float32,
                                  minval=0.0, maxval=10.0)
    # Inject invalid (zero) ground-truth pixels to exercise valid_mask.
    drop = jax.random.bernoulli(k3, 0.3, (B, C, H, W))
    depth_gt = jnp.where(drop, 0.0, depth_gt)

    cases = [
        dict(valid_mask=True, loss_weight=1.0, max_depth=None),
        dict(valid_mask=True, loss_weight=0.5, max_depth=8.0),
        dict(valid_mask=False, loss_weight=1.0, max_depth=None),
    ]
    for cfg in cases:
        got = jax.block_until_ready(sigloss_pallas(depth_pred, depth_gt, **cfg))
        want = sigloss_ref(depth_pred, depth_gt, **cfg)
        np.testing.assert_allclose(np.asarray(got), np.asarray(want),
                                   rtol=2e-5, atol=1e-6)

    # Odd total (1320 = 10*128 + 40): multi-block grid with a partial last
    # block (in-kernel row-bound mask) plus a plain-JAX tail, forced via a
    # tiny max_block_rows.
    k4, k5, k6 = jax.random.split(jax.random.PRNGKey(1), 3)
    shp = (1, 1, 40, 33)
    p2 = jax.random.uniform(k4, shp, jnp.float32, minval=0.1, maxval=10.0)
    g2 = jax.random.uniform(k5, shp, jnp.float32, minval=0.0, maxval=10.0)
    g2 = jnp.where(jax.random.bernoulli(k6, 0.3, shp), 0.0, g2)
    for cfg in cases:
        got = jax.block_until_ready(
            sigloss_pallas(p2, g2, max_block_rows=8, **cfg))
        want = sigloss_ref(p2, g2, **cfg)
        np.testing.assert_allclose(np.asarray(got), np.asarray(want),
                                   rtol=2e-5, atol=1e-6)

    print("KERNEL_OK")
</pallas_src>

<mosaic_0001>
module attributes {stable_mosaic.version = 11 : i64} {
  func.func @_sigloss_partial_kernel(%arg0: i32, %arg1: memref<32x128xf32, #tpu.memory_space<vmem>>, %arg2: memref<32x128xf32, #tpu.memory_space<vmem>>, %arg3: memref<1x8x128xf32, #tpu.memory_space<vmem>>) attributes {dimension_semantics = [#tpu.dimension_semantics<parallel>], iteration_bounds = array<i64: 1>, scalar_prefetch = 0 : i64, scratch_operands = 0 : i64, tpu.core_type = #tpu.core_type<tc>, window_params = [{transform_indices = @transform_0, window_bounds = array<i64: 32, 128>}, {transform_indices = @transform_1, window_bounds = array<i64: 32, 128>}, {transform_indices = @transform_2, window_bounds = array<i64: 1, 8, 128>}]} {
    %c0 = arith.constant 0 : index
    %c0_0 = arith.constant 0 : index
    %0 = vector.load %arg1[%c0, %c0_0] : memref<32x128xf32, #tpu.memory_space<vmem>>, vector<32x128xf32>
    %c0_1 = arith.constant 0 : index
    %c0_2 = arith.constant 0 : index
    %1 = vector.load %arg2[%c0_1, %c0_2] : memref<32x128xf32, #tpu.memory_space<vmem>>, vector<32x128xf32>
    %cst = arith.constant 1.000000e-03 : f32
    %2 = vector.broadcast %cst : f32 to vector<32x128xf32>
    %3 = arith.addf %0, %2 : vector<32x128xf32>
    %4 = math.log %3 : vector<32x128xf32>
    %cst_3 = arith.constant 1.000000e-03 : f32
    %5 = vector.broadcast %cst_3 : f32 to vector<32x128xf32>
    %6 = arith.addf %1, %5 : vector<32x128xf32>
    %7 = math.log %6 : vector<32x128xf32>
    %8 = arith.subf %4, %7 : vector<32x128xf32>
    %cst_4 = arith.constant 0.000000e+00 : f32
    %9 = vector.broadcast %cst_4 : f32 to vector<32x128xf32>
    %10 = arith.cmpf ogt, %1, %9 : vector<32x128xf32>
    %cst_5 = arith.constant 0.000000e+00 : f32
    %11 = vector.broadcast %cst_5 : f32 to vector<32x128xf32>
    %12 = arith.select %10, %8, %11 : vector<32x128xi1>, vector<32x128xf32>
    %cst_6 = arith.constant dense<0.000000e+00> : vector<128xf32>
    %13 = vector.multi_reduction <add>, %12, %cst_6 [0] : vector<32x128xf32> to vector<128xf32>
    %14 = vector.shape_cast %13 : vector<128xf32> to vector<1x128xf32>
    %15 = arith.mulf %12, %12 : vector<32x128xf32>
    %cst_7 = arith.constant dense<0.000000e+00> : vector<128xf32>
    %16 = vector.multi_reduction <add>, %15, %cst_7 [0] : vector<32x128xf32> to vector<128xf32>
    %17 = vector.shape_cast %16 : vector<128xf32> to vector<1x128xf32>
    %18 = arith.extui %10 : vector<32x128xi1> to vector<32x128xi32>
    %19 = arith.sitofp %18 : vector<32x128xi32> to vector<32x128xf32>
    %cst_8 = arith.constant dense<0.000000e+00> : vector<128xf32>
    %20 = vector.multi_reduction <add>, %19, %cst_8 [0] : vector<32x128xf32> to vector<128xf32>
    %21 = vector.shape_cast %20 : vector<128xf32> to vector<1x128xf32>
    %cst_9 = arith.constant 0.000000e+00 : f32
    %22 = vector.broadcast %cst_9 : f32 to vector<5x128xf32>
    %23 = tpu.concatenate %14, %17, %21, %22 in 0 : vector<1x128xf32>, vector<1x128xf32>, vector<1x128xf32>, vector<5x128xf32> -> vector<8x128xf32>
    %24 = vector.shape_cast %23 : vector<8x128xf32> to vector<1x8x128xf32>
    %c0_10 = arith.constant 0 : index
    %c0_11 = arith.constant 0 : index
    %c0_12 = arith.constant 0 : index
    %25 = vector.load %arg3[%c0_10, %c0_11, %c0_12] : memref<1x8x128xf32, #tpu.memory_space<vmem>>, vector<1x8x128xf32>
    tpu.vector_store %arg3[%c0_10, %c0_11, %c0_12], %24 {strides = array<i32>} : memref<1x8x128xf32, #tpu.memory_space<vmem>>, vector<1x8x128xf32>,
    return
  }
  func.func @transform_0(%arg0: i32) -> (i32, i32) {
    %c0_i32 = arith.constant 0 : i32
    %c0_i32_0 = arith.constant 0 : i32
    return %arg0, %c0_i32 : i32, i32
  }
  func.func @transform_1(%arg0: i32) -> (i32, i32) {
    %c0_i32 = arith.constant 0 : i32
    %c0_i32_0 = arith.constant 0 : i32
    return %arg0, %c0_i32 : i32, i32
  }
  func.func @transform_2(%arg0: i32) -> (i32, i32, i32) {
    %c0_i32 = arith.constant 0 : i32
    %c0_i32_0 = arith.constant 0 : i32
    %c0_i32_1 = arith.constant 0 : i32
    return %arg0, %c0_i32, %c0_i32_0 : i32, i32, i32
  }
}

</mosaic_0001>

<llo_original>
// kernel: tpu_custom_call.1
$region0: #{tpu_custom_call.1}
  #allocation0 [shape = 'u32[]', space=smem, size = 0x4, offset = 0x4, fixed_abs, tag = 'smem constant byte address 0x4 - core index']
  #allocation1 [shape = 'u32[144,128]{1,0:T(1,128)}', space=vmem, size = 0x12000, scoped, tag = 'internal scratch']
  %s0 = inlined_call_operand.hbm [shape: f32[32,128], index: 0, kind: input, shape index: {}]
  %s1 = inlined_call_operand.hbm [shape: f32[32,128], index: 1, kind: input, shape index: {}]
  %s2 = inlined_call_operand.hbm [shape: f32[1,8,128], index: 2, kind: output, shape index: {}]
  %s3 = sld [smem:[#allocation0]]
  $region26: #{tpu_custom_call.1} parent=0
    _
  %s5 = ssub.s32 1, %s3
  %s6 = scalar_select 0, %s5, %s3
  $region1: #{tpu_custom_call.1} parent=0
    #allocation2 [shape = 'u8[16384]{0}', space=vmem, size = 0x4000, scoped, tag = 'input window, operand 0, single buffered']
    #allocation3 [shape = 's32[1]{0}', space=sflag, size = 0x4, scoped, tag = 'scoped memory for tpu_custom_call.1']
    #allocation4 [shape = 's32[1]{0}', space=sflag, size = 0x4, scoped, tag = 'scoped memory for tpu_custom_call.1']
    #allocation5 [shape = 'u8[16384]{0}', space=vmem, size = 0x4000, scoped, tag = 'input window, operand 1, single buffered']
    #allocation6 [shape = 's32[1]{0}', space=sflag, size = 0x4, scoped, tag = 'scoped memory for tpu_custom_call.1']
    #allocation7 [shape = 'u8[4096]{0}', space=vmem, size = 0x1000, scoped, tag = 'output window, operand 0, single buffered']
    %7 = vsyncpa [#allocation3], 0
    %8 = vsyncpa [#allocation6], 0
    %9 = vsyncpa [#allocation4], 0
    // Predicated region
    $region2: #{tpu_custom_call.1} parent=1 // pred_check
      _
    $region3: #{tpu_custom_call.1} parent=1 // pred_check_branch
      %11 = sbr.rel (0) target = $region5
    $region4: #{tpu_custom_call.1} parent=1 // pred_region
      %s13 = ssub.s32 512, 512
      %14 = vsyncadd [#allocation3], %s13
      %s15 = sshll.u32 [#allocation2], 4
      %s16 = int_to_ptr.vmem [resolvable:$true] %s15
      %21 = dma.hbm_to_vmem [thread:$0]  %s0, 512, %s16, [#allocation3], 128, 128, 8
    $region5: #{tpu_custom_call.1} parent=1 // pred_fallthru
      _
    // Predicated region
    $region6: #{tpu_custom_call.1} parent=1 // pred_check
      _
    $region7: #{tpu_custom_call.1} parent=1 // pred_check_branch
      %23 = sbr.rel (0) target = $region9
    $region8: #{tpu_custom_call.1} parent=1 // pred_region
      %s25 = ssub.s32 512, 512
      %26 = vsyncadd [#allocation6], %s25
      %s27 = sshll.u32 [#allocation5], 4
      %s28 = int_to_ptr.vmem [resolvable:$true] %s27
      %33 = dma.hbm_to_vmem [thread:$0]  %s1, 512, %s28, [#allocation6], 128, 128, 8
    $region9: #{tpu_custom_call.1} parent=1 // pred_fallthru
      _
    // Predicated region
    $region10: #{tpu_custom_call.1} parent=1 // pred_check
      _
    $region11: #{tpu_custom_call.1} parent=1 // pred_check_branch
      %35 = sbr.rel (0) target = $region13
    $region12: #{tpu_custom_call.1} parent=1 // pred_region
      %36 = dma.done [#allocation3], 512
    $region13: #{tpu_custom_call.1} parent=1 // pred_fallthru
      _
    // Predicated region
    $region14: #{tpu_custom_call.1} parent=1 // pred_check
      _
    $region15: #{tpu_custom_call.1} parent=1 // pred_check_branch
      %38 = sbr.rel (0) target = $region17
    $region16: #{tpu_custom_call.1} parent=1 // pred_region
      %39 = dma.done [#allocation6], 512
    $region17: #{tpu_custom_call.1} parent=1 // pred_fallthru
      _
    %v40 = vld [vmem:[#allocation2] sm:$0xff]
    %v41 = vld [vmem:[#allocation2 + $0x8] sm:$0xff]
    %v42 = vld [vmem:[#allocation2 + $0x10] sm:$0xff]
    %v43 = vld [vmem:[#allocation2 + $0x18] sm:$0xff]
    %v44 = vld [vmem:[#allocation5] sm:$0xff]
    %v45 = vld [vmem:[#allocation5 + $0x8] sm:$0xff]
    %v46 = vld [vmem:[#allocation5 + $0x10] sm:$0xff]
    %v47 = vld [vmem:[#allocation5 + $0x18] sm:$0xff]
    %v48 = vadd.f32 %v40, 0.001
    %v49 = vadd.f32 %v41, 0.001
    %v50 = vadd.f32 %v42, 0.001
    %v51 = vadd.f32 %v43, 0.001
    %v52 = vlog2.pop %v48
    %v53 = vmul.f32 %v52, 0.6931472
    %v54 = vlog2.pop %v49
    %v55 = vmul.f32 %v54, 0.6931472
    %v56 = vlog2.pop %v50
    %v57 = vmul.f32 %v56, 0.6931472
    %v58 = vlog2.pop %v51
    %v59 = vmul.f32 %v58, 0.6931472
    %v60 = vadd.f32 %v44, 0.001
    %v61 = vadd.f32 %v45, 0.001
    %v62 = vadd.f32 %v46, 0.001
    %v63 = vadd.f32 %v47, 0.001
    %v64 = vlog2.pop %v60
    %v65 = vmul.f32 %v64, 0.6931472
    %v66 = vlog2.pop %v61
    %v67 = vmul.f32 %v66, 0.6931472
    %v68 = vlog2.pop %v62
    %v69 = vmul.f32 %v68, 0.6931472
    %v70 = vlog2.pop %v63
    %v71 = vmul.f32 %v70, 0.6931472
    %v72 = vsub.f32 %v53, %v65
    %v73 = vsub.f32 %v55, %v67
    %v74 = vsub.f32 %v57, %v69
    %v75 = vsub.f32 %v59, %v71
    %vm76 = vcmp.gt.f32.partialorder %v44, 0.0
    %vm77 = vcmp.gt.f32.partialorder %v45, 0.0
    %vm78 = vcmp.gt.f32.partialorder %v46, 0.0
    %vm79 = vcmp.gt.f32.partialorder %v47, 0.0
    %v80 = vsel %vm76, %v72, 0.0
    %v81 = vsel %vm77, %v73, 0.0
    %v82 = vsel %vm78, %v74, 0.0
    %v83 = vsel %vm79, %v75, 0.0
    %v84 = vadd.f32 %v80, %v81
    %v85 = vadd.f32 %v84, %v82
    %v86 = vadd.f32 %v85, %v83
    %v87 = vrot.slane %v86, 4
    %v88 = vadd.f32 %v86, %v87
    %v89 = vrot.slane %v88, 2
    %v90 = vadd.f32 %v88, %v89
    %v91 = vrot.slane %v90, 1
    %v92 = vadd.f32 %v90, %v91
    %v93 = vmul.f32 %v80, %v80
    %v94 = vmul.f32 %v81, %v81
    %v95 = vmul.f32 %v82, %v82
    %v96 = vmul.f32 %v83, %v83
    %v97 = vadd.f32 %v93, %v94
    %v98 = vadd.f32 %v97, %v95
    %v99 = vadd.f32 %v98, %v96
    %v100 = vrot.slane %v99, 4
    %v101 = vadd.f32 %v99, %v100
    %v102 = vrot.slane %v101, 2
    %v103 = vadd.f32 %v101, %v102
    %v104 = vrot.slane %v103, 1
    %v105 = vadd.f32 %v103, %v104
    %v106 = vsel %vm76, 1, 0
    %v107 = vsel %vm77, 1, 0
    %v108 = vsel %vm78, 1, 0
    %v109 = vsel %vm79, 1, 0
    %v110 = vcvt.s32.f32 %v106
    %v111 = vcvt.s32.f32 %v107
    %v112 = vcvt.s32.f32 %v108
    %v113 = vcvt.s32.f32 %v109
    %v114 = vadd.f32 %v110, %v111
    %v115 = vadd.f32 %v114, %v112
    %v116 = vadd.f32 %v115, %v113
    %v117 = vrot.slane %v116, 4
    %v118 = vadd.f32 %v116, %v117
    %v119 = vrot.slane %v118, 2
    %v120 = vadd.f32 %v118, %v119
    %v121 = vrot.slane %v120, 1
    %v122 = vadd.f32 %v120, %v121
    %vm123 = vcmask 1040384
    %v124 = vsel %vm123, %v92, %v105
    %vm125 = vcmask 1041408
    %v126 = vsel %vm125, %v124, %v122
    %vm127 = vcmask 1042432
    %v128 = vsel %vm127, %v126, 0.0
    %129 = vst [vmem:[#allocation7] sm:$0xff] %v128
    // Predicated region
    $region18: #{tpu_custom_call.1} parent=1 // pred_check
      _
    $region19: #{tpu_custom_call.1} parent=1 // pred_check_branch
      %131 = sbr.rel (0) target = $region21
    $region20: #{tpu_custom_call.1} parent=1 // pred_region
      %s133 = ssub.s32 128, 128
      %134 = vsyncadd [#allocation4], %s133
      %s136 = sshll.u32 [#allocation7], 4
      %s137 = int_to_ptr.vmem [resolvable:$true] %s136
      %139 = dma.vmem_to_hbm [thread:$0]  %s137, 128, %s2, [#allocation4]
    $region21: #{tpu_custom_call.1} parent=1 // pred_fallthru
      _
    // Predicated region
    $region22: #{tpu_custom_call.1} parent=1 // pred_check
      _
    $region23: #{tpu_custom_call.1} parent=1 // pred_check_branch
      %141 = sbr.rel (0) target = $region25
    $region24: #{tpu_custom_call.1} parent=1 // pred_region
      %142 = dma.done [#allocation4], 128
    $region25: #{tpu_custom_call.1} parent=1 // pred_fallthru
      _
    %143 = vsyncpa [#allocation3], 1
    %144 = vsyncpa [#allocation6], 1
    %145 = vsyncpa [#allocation4], 1

</llo_original>
